<compile_context>
chip_gen: v6e
topology: v6e:2x2x1
jax: 0.10.0
libtpu: 0.0.40
codegen_flags: <defaults>
</compile_context>

<pallas_src>
import math
import functools

import jax
import jax.numpy as jnp
from jax.experimental import pallas as pl
from jax.experimental.pallas import tpu as pltpu

_LANE = 128  # lane-dense output width (tokens in [0:mem_size], mask in [mem_size:2*mem_size])


def _round_up(x, m):
    return (x + m - 1) // m * m


def _blk_trans(params, x):
    """blk_trans: Linear(d_emb, 2d) -> ReLU -> Dropout(eval: identity) -> Linear(2d, d) -> LayerNorm.
    PyTorch nn.Linear layout: W is (out, in), y = x @ W^T."""
    h = jnp.maximum(x @ params["w1"].T + params["b1"], 0.0)
    h = h @ params["w2"].T + params["b2"]
    mu = jnp.mean(h, axis=-1, keepdims=True)
    var = jnp.mean(jnp.square(h - mu), axis=-1, keepdims=True)
    return (h - mu) * jax.lax.rsqrt(var + 1e-5) * params["ln_g"] + params["ln_b"]


def fold_params(params):
    """One-time fold at model load (hoisted out of the per-decode-step call path).

      energy[b, l] = (q @ Wq^T) . (blk_trans(emb[tok]) @ Wk^T) / sqrt(d)
                   = q . ( blk_trans(emb) @ Wk^T @ Wq / sqrt(d) )[tok]

    Returns the folded (vocab, d_model) table in bf16 (halves table DMA / VMEM).
    linear_v is dead in the reference forward and is not computed.
    """
    h = _blk_trans(params, params["emb_table"].astype(jnp.float32))     # (vocab, d)
    d_model = params["wq"].shape[0]
    table_f = (h @ params["wk"].T @ params["wq"]) / jnp.sqrt(jnp.float32(d_model))
    return table_f.astype(jnp.bfloat16)


def _make_kernel(bt, mem_len, vocab, mem_size, out_width):
    def kernel(tok_ref, mask_ref, q_ref, table_ref, out_ref):
        tokens = tok_ref[...]                        # (bt, mem_len) int32
        mask = mask_ref[...]                         # (bt, mem_len) int32 (0/1)
        q = q_ref[...]                               # (bt, d)       float32
        table = table_ref[...].astype(jnp.float32)   # (vocab, d)    bf16 -> f32 upcast

        # ---- energy: one MXU matmul against the folded table, then an
        #      in-register gather (no (bs, mem_len, d) emb tensor anywhere) ----
        # S[b, v] = q[b] . table_f[v]   (all weights and 1/sqrt(d) pre-folded)
        s = jax.lax.dot_general(q, table, (((1,), (1,)), ((), ())),
                                preferred_element_type=jnp.float32)     # (bt, vocab)

        vocab_iota = jax.lax.broadcasted_iota(jnp.int32, (bt, vocab), 1)
        col = jax.lax.broadcasted_iota(jnp.int32, (bt, mem_len), 1)
        energy = jnp.zeros((bt, mem_len), jnp.float32)
        for l in range(mem_len):                     # static unroll; mem_len is small
            tok_l = tokens[:, l:l + 1]               # (bt, 1)
            e_l = jnp.sum(jnp.where(vocab_iota == tok_l, s, 0.0),
                          axis=-1, keepdims=True)    # (bt, 1) == S[b, tokens[b, l]]
            energy = jnp.where(col == l, e_l, energy)

        # ---- softmax over the memory axis, then mask (same order as the reference) ----
        e_max = jnp.max(energy, axis=-1, keepdims=True)
        p = jnp.exp(energy - e_max)
        denom = jnp.sum(p, axis=-1, keepdims=True)
        att = p * pl.reciprocal(denom, approx=True)           # EUP reciprocal
        att = jnp.where(mask == 0, jnp.float32(0.0), att)     # masked_fill AFTER softmax

        # ---- top-k + gather: 2 cross-lane reductions per pick -------------
        # key = col*C + (token*2 + mask); min over argmax positions gives the
        # first-occurrence argmax column AND the packed (token, mask) at once.
        pack_c = 1 << (2 * vocab - 1).bit_length()   # pow2 > max packed value
        shift_c = pack_c.bit_length() - 1
        packed = tokens * 2 + mask                   # assumes tokens >= 0, mask in {0,1}
        key_all = col * pack_c + packed
        big = jnp.int32(mem_len * pack_c)
        lane = jax.lax.broadcasted_iota(jnp.int32, (bt, out_width), 1)

        out_acc = jnp.zeros((bt, out_width), jnp.int32)
        for i in range(mem_size):                    # static unroll; mem_size is small
            row_max = jnp.max(att, axis=-1, keepdims=True)                 # reduction 1
            kmin = jnp.min(jnp.where(att == row_max, key_all, big),
                           axis=-1, keepdims=True)                          # reduction 2
            idx = kmin >> shift_c                    # picked column (first occurrence)
            sel = kmin & (pack_c - 1)                # packed (token, mask) of the pick
            out_acc = jnp.where(lane == i, sel >> 1, out_acc)               # token
            out_acc = jnp.where(lane == (mem_size + i), sel & 1, out_acc)   # mask
            att = jnp.where(col == idx, jnp.float32(-1.0), att)             # remove pick

        out_ref[...] = out_acc                       # single lane-dense (bt, 128) store

    return kernel


@functools.partial(jax.jit, static_argnames=("mem_size",))
def memory_update(tokens, mask, query, table_f, mem_size):
    """Pallas forward of MemoryUpdate: returns (mem_output, mask_output), each (bs, mem_size)."""
    bs, mem_len = tokens.shape
    vocab, d_model = table_f.shape
    assert mem_size <= mem_len, "mem_size must not exceed mem_len"
    assert 2 * mem_size <= _LANE
    assert mem_len * (1 << (2 * vocab - 1).bit_length()) < 2 ** 31  # packed key fits int32

    tokens = tokens.astype(jnp.int32)
    mask = mask.astype(jnp.int32)
    query = query.astype(jnp.float32)

    # Batch tile: up to 128 rows per grid step (fills the MXU M dim, amortizes
    # per-step overhead); pad bs instead of a giant single block.
    bt = 128 if bs >= 128 else _round_up(bs, 8)
    bs_pad = _round_up(bs, bt)
    if bs_pad != bs:
        pad = bs_pad - bs
        tokens = jnp.pad(tokens, ((0, pad), (0, 0)))
        mask = jnp.pad(mask, ((0, pad), (0, 0)))
        query = jnp.pad(query, ((0, pad), (0, 0)))
    grid = (bs_pad // bt,)

    # VMEM budget: double-buffered per-step blocks + the resident folded table.
    blk_bytes = bt * mem_len * 4 * 2 + bt * d_model * 4 + bt * _LANE * 4
    table_bytes = vocab * d_model * 2
    vmem_limit = int(min(64 * 2 ** 20,
                         max(32 * 2 ** 20, 2 * blk_bytes + table_bytes + 4 * 2 ** 20)))

    out = pl.pallas_call(
        _make_kernel(bt, mem_len, vocab, mem_size, _LANE),
        out_shape=jax.ShapeDtypeStruct((bs_pad, _LANE), jnp.int32),
        grid=grid,
        in_specs=[
            pl.BlockSpec((bt, mem_len), lambda b: (b, 0)),        # tokens
            pl.BlockSpec((bt, mem_len), lambda b: (b, 0)),        # mask
            pl.BlockSpec((bt, d_model), lambda b: (b, 0)),        # query
            # Grid-invariant folded table: whole array resident in VMEM once
            # (single-buffered, no per-step re-DMA).
            pl.BlockSpec(memory_space=pltpu.MemorySpace.VMEM),
        ],
        out_specs=pl.BlockSpec((bt, _LANE), lambda b: (b, 0)),    # lane-dense store
        compiler_params=pltpu.CompilerParams(
            # TODO(synk): on v7x try pltpu.CORE_PARALLEL on this axis to shard
            #             the batch grid across the 2 TensorCores.
            dimension_semantics=("parallel",),
            vmem_limit_bytes=vmem_limit,
        ),
    )(tokens, mask, query, table_f)

    return out[:bs, :mem_size], out[:bs, mem_size:2 * mem_size]


if __name__ == "__main__":
    bs, mem_len, d_model, mem_size = 2, 16, 32, 4
    vocab, d_emb = 64, 48

    key = jax.random.PRNGKey(0)
    ks = jax.random.split(key, 12)

    tokens = jax.random.randint(ks[0], (bs, mem_len), 0, vocab, dtype=jnp.int32)
    mask = (jax.random.uniform(ks[1], (bs, mem_len)) > 0.3).astype(jnp.int32)
    mask = mask.at[:, :mem_size].set(1)          # ensure >= mem_size unmasked entries/row
    query = jax.random.normal(ks[2], (bs, d_model), dtype=jnp.float32)

    init = lambda k, shape, s: jax.random.normal(k, shape, jnp.float32) * s
    params = dict(                                   # PyTorch nn.Linear (out, in) layout
        emb_table=init(ks[3], (vocab, d_emb), 0.5),                        # frozen blk_emb
        w1=init(ks[4], (2 * d_model, d_emb), 1.0 / math.sqrt(d_emb)),      # blk_trans Linear 1
        b1=init(ks[5], (2 * d_model,), 0.05),
        w2=init(ks[6], (d_model, 2 * d_model), 1.0 / math.sqrt(2 * d_model)),  # blk_trans Linear 2
        b2=init(ks[7], (d_model,), 0.05),
        ln_g=1.0 + 0.1 * init(ks[8], (d_model,), 1.0),                     # blk_trans LayerNorm
        ln_b=0.05 * init(ks[9], (d_model,), 1.0),
        wq=init(ks[10], (d_model, d_model), 1.0 / math.sqrt(d_model)),     # linear_q (bias=False)
        wk=init(ks[11], (d_model, d_model), 1.0 / math.sqrt(d_model)),     # linear_k (bias=False)
    )

    # ---- one-time fold (model-load time), outside the per-step call path ----
    with jax.default_matmul_precision("highest"):
        table_f = fold_params(params)

    # ---- run the Pallas kernel ----
    mem_out, mask_out = memory_update(tokens, mask, query, table_f, mem_size)
    jax.block_until_ready((mem_out, mask_out))
    assert mem_out.shape == (bs, mem_size) and mask_out.shape == (bs, mem_size)
    assert mem_out.dtype == jnp.int32 and mask_out.dtype == jnp.int32

    with jax.default_matmul_precision("highest"):
        # ---- check 1: the weight fold reproduces the reference energy (f32) ----
        h = _blk_trans(params, params["emb_table"])
        q_proj = query @ params["wq"].T
        key_rows = h[tokens] @ params["wk"].T
        energy_ref = jnp.einsum("bd,bld->bl", q_proj, key_rows) / math.sqrt(d_model)
        table_fold_f32 = (h @ params["wk"].T @ params["wq"]) / math.sqrt(d_model)
        energy_fold = jnp.einsum("bd,bld->bl", query, table_fold_f32[tokens])
        assert jnp.allclose(energy_ref, energy_fold, rtol=1e-4, atol=1e-4)

        # ---- check 2: kernel picks == reference picks (same bf16 folded table) ----
        energy_bf = jnp.einsum("bd,bld->bl", query, table_f.astype(jnp.float32)[tokens])
        att = jax.nn.softmax(energy_bf, axis=-1)
        att = jnp.where(mask == 0, 0.0, att)
        _, idx = jax.lax.top_k(att, mem_size)
        ref_tok = jnp.take_along_axis(tokens, idx, axis=1)
        ref_msk = jnp.take_along_axis(mask, idx, axis=1)
        assert jnp.array_equal(mem_out, ref_tok)
        assert jnp.array_equal(mask_out, ref_msk)

    print("KERNEL_OK")
</pallas_src>

<mosaic_0001>
module attributes {stable_mosaic.version = 11 : i64} {
  func.func @kernel(%arg0: i32, %arg1: memref<8x16xi32, #tpu.memory_space<vmem>>, %arg2: memref<8x16xi32, #tpu.memory_space<vmem>>, %arg3: memref<8x32xf32, #tpu.memory_space<vmem>>, %arg4: memref<64x32xbf16, #tpu.memory_space<vmem>>, %arg5: memref<8x128xi32, #tpu.memory_space<vmem>>) attributes {dimension_semantics = [#tpu.dimension_semantics<parallel>], iteration_bounds = array<i64: 1>, scalar_prefetch = 0 : i64, scratch_operands = 0 : i64, tpu.core_type = #tpu.core_type<tc>, window_params = [{transform_indices = @transform_0, window_bounds = array<i64: 8, 16>}, {transform_indices = @transform_1, window_bounds = array<i64: 8, 16>}, {transform_indices = @transform_2, window_bounds = array<i64: 8, 32>}, {pipeline_mode = #tpu.pipeline_mode<synchronous>, transform_indices = @transform_3, window_bounds = array<i64: 64, 32>}, {transform_indices = @transform_4, window_bounds = array<i64: 8, 128>}]} {
    %c0 = arith.constant 0 : index
    %c0_0 = arith.constant 0 : index
    %0 = vector.load %arg1[%c0, %c0_0] : memref<8x16xi32, #tpu.memory_space<vmem>>, vector<8x16xi32>
    %c0_1 = arith.constant 0 : index
    %c0_2 = arith.constant 0 : index
    %1 = vector.load %arg2[%c0_1, %c0_2] : memref<8x16xi32, #tpu.memory_space<vmem>>, vector<8x16xi32>
    %c0_3 = arith.constant 0 : index
    %c0_4 = arith.constant 0 : index
    %2 = vector.load %arg3[%c0_3, %c0_4] : memref<8x32xf32, #tpu.memory_space<vmem>>, vector<8x32xf32>
    %c0_5 = arith.constant 0 : index
    %c0_6 = arith.constant 0 : index
    %3 = vector.load %arg4[%c0_5, %c0_6] : memref<64x32xbf16, #tpu.memory_space<vmem>>, vector<64x32xbf16>
    %4 = arith.extf %3 : vector<64x32xbf16> to vector<64x32xf32>
    %cst = arith.constant dense<0.000000e+00> : vector<8x64xf32>
    %5 = tpu.matmul %2, %4, %cst {dimension_numbers = #tpu.dot_dimension_numbers<[1], [1], [0], [0], [0, 0, 1, 0], [], []>} : vector<8x32xf32>, vector<64x32xf32>, vector<8x64xf32> -> vector<8x64xf32>
    %6 = tpu.iota {dimensions = array<i32: 1>} : vector<8x64xi32>
    %7 = tpu.iota {dimensions = array<i32: 1>} : vector<8x16xi32>
    %cst_7 = arith.constant 0.000000e+00 : f32
    %8 = vector.broadcast %cst_7 : f32 to vector<8x16xf32>
    %9 = vector.extract_strided_slice %0 {offsets = [0, 0], sizes = [8, 1], strides = [1, 1]} : vector<8x16xi32> to vector<8x1xi32>
    %10 = vector.broadcast %9 : vector<8x1xi32> to vector<8x64xi32>
    %11 = arith.cmpi eq, %6, %10 : vector<8x64xi32>
    %cst_8 = arith.constant 0.000000e+00 : f32
    %12 = vector.broadcast %cst_8 : f32 to vector<8x64xf32>
    %13 = arith.select %11, %5, %12 : vector<8x64xi1>, vector<8x64xf32>
    %cst_9 = arith.constant dense<0.000000e+00> : vector<8xf32>
    %14 = vector.multi_reduction <add>, %13, %cst_9 [1] : vector<8x64xf32> to vector<8xf32>
    %15 = vector.shape_cast %14 : vector<8xf32> to vector<8x1xf32>
    %c0_i32 = arith.constant 0 : i32
    %16 = vector.broadcast %c0_i32 : i32 to vector<8x16xi32>
    %17 = arith.cmpi eq, %7, %16 : vector<8x16xi32>
    %18 = vector.shape_cast %15 : vector<8x1xf32> to vector<8x1xf32>
    %19 = vector.broadcast %18 : vector<8x1xf32> to vector<8x16xf32>
    %20 = arith.select %17, %19, %8 : vector<8x16xi1>, vector<8x16xf32>
    %21 = vector.extract_strided_slice %0 {offsets = [0, 1], sizes = [8, 1], strides = [1, 1]} : vector<8x16xi32> to vector<8x1xi32>
    %22 = vector.broadcast %21 : vector<8x1xi32> to vector<8x64xi32>
    %23 = arith.cmpi eq, %6, %22 : vector<8x64xi32>
    %cst_10 = arith.constant 0.000000e+00 : f32
    %24 = vector.broadcast %cst_10 : f32 to vector<8x64xf32>
    %25 = arith.select %23, %5, %24 : vector<8x64xi1>, vector<8x64xf32>
    %cst_11 = arith.constant dense<0.000000e+00> : vector<8xf32>
    %26 = vector.multi_reduction <add>, %25, %cst_11 [1] : vector<8x64xf32> to vector<8xf32>
    %27 = vector.shape_cast %26 : vector<8xf32> to vector<8x1xf32>
    %c1_i32 = arith.constant 1 : i32
    %28 = vector.broadcast %c1_i32 : i32 to vector<8x16xi32>
    %29 = arith.cmpi eq, %7, %28 : vector<8x16xi32>
    %30 = vector.shape_cast %27 : vector<8x1xf32> to vector<8x1xf32>
    %31 = vector.broadcast %30 : vector<8x1xf32> to vector<8x16xf32>
    %32 = arith.select %29, %31, %20 : vector<8x16xi1>, vector<8x16xf32>
    %33 = vector.extract_strided_slice %0 {offsets = [0, 2], sizes = [8, 1], strides = [1, 1]} : vector<8x16xi32> to vector<8x1xi32>
    %34 = vector.broadcast %33 : vector<8x1xi32> to vector<8x64xi32>
    %35 = arith.cmpi eq, %6, %34 : vector<8x64xi32>
    %cst_12 = arith.constant 0.000000e+00 : f32
    %36 = vector.broadcast %cst_12 : f32 to vector<8x64xf32>
    %37 = arith.select %35, %5, %36 : vector<8x64xi1>, vector<8x64xf32>
    %cst_13 = arith.constant dense<0.000000e+00> : vector<8xf32>
    %38 = vector.multi_reduction <add>, %37, %cst_13 [1] : vector<8x64xf32> to vector<8xf32>
    %39 = vector.shape_cast %38 : vector<8xf32> to vector<8x1xf32>
    %c2_i32 = arith.constant 2 : i32
    %40 = vector.broadcast %c2_i32 : i32 to vector<8x16xi32>
    %41 = arith.cmpi eq, %7, %40 : vector<8x16xi32>
    %42 = vector.shape_cast %39 : vector<8x1xf32> to vector<8x1xf32>
    %43 = vector.broadcast %42 : vector<8x1xf32> to vector<8x16xf32>
    %44 = arith.select %41, %43, %32 : vector<8x16xi1>, vector<8x16xf32>
    %45 = vector.extract_strided_slice %0 {offsets = [0, 3], sizes = [8, 1], strides = [1, 1]} : vector<8x16xi32> to vector<8x1xi32>
    %46 = vector.broadcast %45 : vector<8x1xi32> to vector<8x64xi32>
    %47 = arith.cmpi eq, %6, %46 : vector<8x64xi32>
    %cst_14 = arith.constant 0.000000e+00 : f32
    %48 = vector.broadcast %cst_14 : f32 to vector<8x64xf32>
    %49 = arith.select %47, %5, %48 : vector<8x64xi1>, vector<8x64xf32>
    %cst_15 = arith.constant dense<0.000000e+00> : vector<8xf32>
    %50 = vector.multi_reduction <add>, %49, %cst_15 [1] : vector<8x64xf32> to vector<8xf32>
    %51 = vector.shape_cast %50 : vector<8xf32> to vector<8x1xf32>
    %c3_i32 = arith.constant 3 : i32
    %52 = vector.broadcast %c3_i32 : i32 to vector<8x16xi32>
    %53 = arith.cmpi eq, %7, %52 : vector<8x16xi32>
    %54 = vector.shape_cast %51 : vector<8x1xf32> to vector<8x1xf32>
    %55 = vector.broadcast %54 : vector<8x1xf32> to vector<8x16xf32>
    %56 = arith.select %53, %55, %44 : vector<8x16xi1>, vector<8x16xf32>
    %57 = vector.extract_strided_slice %0 {offsets = [0, 4], sizes = [8, 1], strides = [1, 1]} : vector<8x16xi32> to vector<8x1xi32>
    %58 = vector.broadcast %57 : vector<8x1xi32> to vector<8x64xi32>
    %59 = arith.cmpi eq, %6, %58 : vector<8x64xi32>
    %cst_16 = arith.constant 0.000000e+00 : f32
    %60 = vector.broadcast %cst_16 : f32 to vector<8x64xf32>
    %61 = arith.select %59, %5, %60 : vector<8x64xi1>, vector<8x64xf32>
    %cst_17 = arith.constant dense<0.000000e+00> : vector<8xf32>
    %62 = vector.multi_reduction <add>, %61, %cst_17 [1] : vector<8x64xf32> to vector<8xf32>
    %63 = vector.shape_cast %62 : vector<8xf32> to vector<8x1xf32>
    %c4_i32 = arith.constant 4 : i32
    %64 = vector.broadcast %c4_i32 : i32 to vector<8x16xi32>
    %65 = arith.cmpi eq, %7, %64 : vector<8x16xi32>
    %66 = vector.shape_cast %63 : vector<8x1xf32> to vector<8x1xf32>
    %67 = vector.broadcast %66 : vector<8x1xf32> to vector<8x16xf32>
    %68 = arith.select %65, %67, %56 : vector<8x16xi1>, vector<8x16xf32>
    %69 = vector.extract_strided_slice %0 {offsets = [0, 5], sizes = [8, 1], strides = [1, 1]} : vector<8x16xi32> to vector<8x1xi32>
    %70 = vector.broadcast %69 : vector<8x1xi32> to vector<8x64xi32>
    %71 = arith.cmpi eq, %6, %70 : vector<8x64xi32>
    %cst_18 = arith.constant 0.000000e+00 : f32
    %72 = vector.broadcast %cst_18 : f32 to vector<8x64xf32>
    %73 = arith.select %71, %5, %72 : vector<8x64xi1>, vector<8x64xf32>
    %cst_19 = arith.constant dense<0.000000e+00> : vector<8xf32>
    %74 = vector.multi_reduction <add>, %73, %cst_19 [1] : vector<8x64xf32> to vector<8xf32>
    %75 = vector.shape_cast %74 : vector<8xf32> to vector<8x1xf32>
    %c5_i32 = arith.constant 5 : i32
    %76 = vector.broadcast %c5_i32 : i32 to vector<8x16xi32>
    %77 = arith.cmpi eq, %7, %76 : vector<8x16xi32>
    %78 = vector.shape_cast %75 : vector<8x1xf32> to vector<8x1xf32>
    %79 = vector.broadcast %78 : vector<8x1xf32> to vector<8x16xf32>
    %80 = arith.select %77, %79, %68 : vector<8x16xi1>, vector<8x16xf32>
    %81 = vector.extract_strided_slice %0 {offsets = [0, 6], sizes = [8, 1], strides = [1, 1]} : vector<8x16xi32> to vector<8x1xi32>
    %82 = vector.broadcast %81 : vector<8x1xi32> to vector<8x64xi32>
    %83 = arith.cmpi eq, %6, %82 : vector<8x64xi32>
    %cst_20 = arith.constant 0.000000e+00 : f32
    %84 = vector.broadcast %cst_20 : f32 to vector<8x64xf32>
    %85 = arith.select %83, %5, %84 : vector<8x64xi1>, vector<8x64xf32>
    %cst_21 = arith.constant dense<0.000000e+00> : vector<8xf32>
    %86 = vector.multi_reduction <add>, %85, %cst_21 [1] : vector<8x64xf32> to vector<8xf32>
    %87 = vector.shape_cast %86 : vector<8xf32> to vector<8x1xf32>
    %c6_i32 = arith.constant 6 : i32
    %88 = vector.broadcast %c6_i32 : i32 to vector<8x16xi32>
    %89 = arith.cmpi eq, %7, %88 : vector<8x16xi32>
    %90 = vector.shape_cast %87 : vector<8x1xf32> to vector<8x1xf32>
    %91 = vector.broadcast %90 : vector<8x1xf32> to vector<8x16xf32>
    %92 = arith.select %89, %91, %80 : vector<8x16xi1>, vector<8x16xf32>
    %93 = vector.extract_strided_slice %0 {offsets = [0, 7], sizes = [8, 1], strides = [1, 1]} : vector<8x16xi32> to vector<8x1xi32>
    %94 = vector.broadcast %93 : vector<8x1xi32> to vector<8x64xi32>
    %95 = arith.cmpi eq, %6, %94 : vector<8x64xi32>
    %cst_22 = arith.constant 0.000000e+00 : f32
    %96 = vector.broadcast %cst_22 : f32 to vector<8x64xf32>
    %97 = arith.select %95, %5, %96 : vector<8x64xi1>, vector<8x64xf32>
    %cst_23 = arith.constant dense<0.000000e+00> : vector<8xf32>
    %98 = vector.multi_reduction <add>, %97, %cst_23 [1] : vector<8x64xf32> to vector<8xf32>
    %99 = vector.shape_cast %98 : vector<8xf32> to vector<8x1xf32>
    %c7_i32 = arith.constant 7 : i32
    %100 = vector.broadcast %c7_i32 : i32 to vector<8x16xi32>
    %101 = arith.cmpi eq, %7, %100 : vector<8x16xi32>
    %102 = vector.shape_cast %99 : vector<8x1xf32> to vector<8x1xf32>
    %103 = vector.broadcast %102 : vector<8x1xf32> to vector<8x16xf32>
    %104 = arith.select %101, %103, %92 : vector<8x16xi1>, vector<8x16xf32>
    %105 = vector.extract_strided_slice %0 {offsets = [0, 8], sizes = [8, 1], strides = [1, 1]} : vector<8x16xi32> to vector<8x1xi32>
    %106 = vector.broadcast %105 : vector<8x1xi32> to vector<8x64xi32>
    %107 = arith.cmpi eq, %6, %106 : vector<8x64xi32>
    %cst_24 = arith.constant 0.000000e+00 : f32
    %108 = vector.broadcast %cst_24 : f32 to vector<8x64xf32>
    %109 = arith.select %107, %5, %108 : vector<8x64xi1>, vector<8x64xf32>
    %cst_25 = arith.constant dense<0.000000e+00> : vector<8xf32>
    %110 = vector.multi_reduction <add>, %109, %cst_25 [1] : vector<8x64xf32> to vector<8xf32>
    %111 = vector.shape_cast %110 : vector<8xf32> to vector<8x1xf32>
    %c8_i32 = arith.constant 8 : i32
    %112 = vector.broadcast %c8_i32 : i32 to vector<8x16xi32>
    %113 = arith.cmpi eq, %7, %112 : vector<8x16xi32>
    %114 = vector.shape_cast %111 : vector<8x1xf32> to vector<8x1xf32>
    %115 = vector.broadcast %114 : vector<8x1xf32> to vector<8x16xf32>
    %116 = arith.select %113, %115, %104 : vector<8x16xi1>, vector<8x16xf32>
    %117 = vector.extract_strided_slice %0 {offsets = [0, 9], sizes = [8, 1], strides = [1, 1]} : vector<8x16xi32> to vector<8x1xi32>
    %118 = vector.broadcast %117 : vector<8x1xi32> to vector<8x64xi32>
    %119 = arith.cmpi eq, %6, %118 : vector<8x64xi32>
    %cst_26 = arith.constant 0.000000e+00 : f32
    %120 = vector.broadcast %cst_26 : f32 to vector<8x64xf32>
    %121 = arith.select %119, %5, %120 : vector<8x64xi1>, vector<8x64xf32>
    %cst_27 = arith.constant dense<0.000000e+00> : vector<8xf32>
    %122 = vector.multi_reduction <add>, %121, %cst_27 [1] : vector<8x64xf32> to vector<8xf32>
    %123 = vector.shape_cast %122 : vector<8xf32> to vector<8x1xf32>
    %c9_i32 = arith.constant 9 : i32
    %124 = vector.broadcast %c9_i32 : i32 to vector<8x16xi32>
    %125 = arith.cmpi eq, %7, %124 : vector<8x16xi32>
    %126 = vector.shape_cast %123 : vector<8x1xf32> to vector<8x1xf32>
    %127 = vector.broadcast %126 : vector<8x1xf32> to vector<8x16xf32>
    %128 = arith.select %125, %127, %116 : vector<8x16xi1>, vector<8x16xf32>
    %129 = vector.extract_strided_slice %0 {offsets = [0, 10], sizes = [8, 1], strides = [1, 1]} : vector<8x16xi32> to vector<8x1xi32>
    %130 = vector.broadcast %129 : vector<8x1xi32> to vector<8x64xi32>
    %131 = arith.cmpi eq, %6, %130 : vector<8x64xi32>
    %cst_28 = arith.constant 0.000000e+00 : f32
    %132 = vector.broadcast %cst_28 : f32 to vector<8x64xf32>
    %133 = arith.select %131, %5, %132 : vector<8x64xi1>, vector<8x64xf32>
    %cst_29 = arith.constant dense<0.000000e+00> : vector<8xf32>
    %134 = vector.multi_reduction <add>, %133, %cst_29 [1] : vector<8x64xf32> to vector<8xf32>
    %135 = vector.shape_cast %134 : vector<8xf32> to vector<8x1xf32>
    %c10_i32 = arith.constant 10 : i32
    %136 = vector.broadcast %c10_i32 : i32 to vector<8x16xi32>
    %137 = arith.cmpi eq, %7, %136 : vector<8x16xi32>
    %138 = vector.shape_cast %135 : vector<8x1xf32> to vector<8x1xf32>
    %139 = vector.broadcast %138 : vector<8x1xf32> to vector<8x16xf32>
    %140 = arith.select %137, %139, %128 : vector<8x16xi1>, vector<8x16xf32>
    %141 = vector.extract_strided_slice %0 {offsets = [0, 11], sizes = [8, 1], strides = [1, 1]} : vector<8x16xi32> to vector<8x1xi32>
    %142 = vector.broadcast %141 : vector<8x1xi32> to vector<8x64xi32>
    %143 = arith.cmpi eq, %6, %142 : vector<8x64xi32>
    %cst_30 = arith.constant 0.000000e+00 : f32
    %144 = vector.broadcast %cst_30 : f32 to vector<8x64xf32>
    %145 = arith.select %143, %5, %144 : vector<8x64xi1>, vector<8x64xf32>
    %cst_31 = arith.constant dense<0.000000e+00> : vector<8xf32>
    %146 = vector.multi_reduction <add>, %145, %cst_31 [1] : vector<8x64xf32> to vector<8xf32>
    %147 = vector.shape_cast %146 : vector<8xf32> to vector<8x1xf32>
    %c11_i32 = arith.constant 11 : i32
    %148 = vector.broadcast %c11_i32 : i32 to vector<8x16xi32>
    %149 = arith.cmpi eq, %7, %148 : vector<8x16xi32>
    %150 = vector.shape_cast %147 : vector<8x1xf32> to vector<8x1xf32>
    %151 = vector.broadcast %150 : vector<8x1xf32> to vector<8x16xf32>
    %152 = arith.select %149, %151, %140 : vector<8x16xi1>, vector<8x16xf32>
    %153 = vector.extract_strided_slice %0 {offsets = [0, 12], sizes = [8, 1], strides = [1, 1]} : vector<8x16xi32> to vector<8x1xi32>
    %154 = vector.broadcast %153 : vector<8x1xi32> to vector<8x64xi32>
    %155 = arith.cmpi eq, %6, %154 : vector<8x64xi32>
    %cst_32 = arith.constant 0.000000e+00 : f32
    %156 = vector.broadcast %cst_32 : f32 to vector<8x64xf32>
    %157 = arith.select %155, %5, %156 : vector<8x64xi1>, vector<8x64xf32>
    %cst_33 = arith.constant dense<0.000000e+00> : vector<8xf32>
    %158 = vector.multi_reduction <add>, %157, %cst_33 [1] : vector<8x64xf32> to vector<8xf32>
    %159 = vector.shape_cast %158 : vector<8xf32> to vector<8x1xf32>
    %c12_i32 = arith.constant 12 : i32
    %160 = vector.broadcast %c12_i32 : i32 to vector<8x16xi32>
    %161 = arith.cmpi eq, %7, %160 : vector<8x16xi32>
    %162 = vector.shape_cast %159 : vector<8x1xf32> to vector<8x1xf32>
    %163 = vector.broadcast %162 : vector<8x1xf32> to vector<8x16xf32>
    %164 = arith.select %161, %163, %152 : vector<8x16xi1>, vector<8x16xf32>
    %165 = vector.extract_strided_slice %0 {offsets = [0, 13], sizes = [8, 1], strides = [1, 1]} : vector<8x16xi32> to vector<8x1xi32>
    %166 = vector.broadcast %165 : vector<8x1xi32> to vector<8x64xi32>
    %167 = arith.cmpi eq, %6, %166 : vector<8x64xi32>
    %cst_34 = arith.constant 0.000000e+00 : f32
    %168 = vector.broadcast %cst_34 : f32 to vector<8x64xf32>
    %169 = arith.select %167, %5, %168 : vector<8x64xi1>, vector<8x64xf32>
    %cst_35 = arith.constant dense<0.000000e+00> : vector<8xf32>
    %170 = vector.multi_reduction <add>, %169, %cst_35 [1] : vector<8x64xf32> to vector<8xf32>
    %171 = vector.shape_cast %170 : vector<8xf32> to vector<8x1xf32>
    %c13_i32 = arith.constant 13 : i32
    %172 = vector.broadcast %c13_i32 : i32 to vector<8x16xi32>
    %173 = arith.cmpi eq, %7, %172 : vector<8x16xi32>
    %174 = vector.shape_cast %171 : vector<8x1xf32> to vector<8x1xf32>
    %175 = vector.broadcast %174 : vector<8x1xf32> to vector<8x16xf32>
    %176 = arith.select %173, %175, %164 : vector<8x16xi1>, vector<8x16xf32>
    %177 = vector.extract_strided_slice %0 {offsets = [0, 14], sizes = [8, 1], strides = [1, 1]} : vector<8x16xi32> to vector<8x1xi32>
    %178 = vector.broadcast %177 : vector<8x1xi32> to vector<8x64xi32>
    %179 = arith.cmpi eq, %6, %178 : vector<8x64xi32>
    %cst_36 = arith.constant 0.000000e+00 : f32
    %180 = vector.broadcast %cst_36 : f32 to vector<8x64xf32>
    %181 = arith.select %179, %5, %180 : vector<8x64xi1>, vector<8x64xf32>
    %cst_37 = arith.constant dense<0.000000e+00> : vector<8xf32>
    %182 = vector.multi_reduction <add>, %181, %cst_37 [1] : vector<8x64xf32> to vector<8xf32>
    %183 = vector.shape_cast %182 : vector<8xf32> to vector<8x1xf32>
    %c14_i32 = arith.constant 14 : i32
    %184 = vector.broadcast %c14_i32 : i32 to vector<8x16xi32>
    %185 = arith.cmpi eq, %7, %184 : vector<8x16xi32>
    %186 = vector.shape_cast %183 : vector<8x1xf32> to vector<8x1xf32>
    %187 = vector.broadcast %186 : vector<8x1xf32> to vector<8x16xf32>
    %188 = arith.select %185, %187, %176 : vector<8x16xi1>, vector<8x16xf32>
    %189 = vector.extract_strided_slice %0 {offsets = [0, 15], sizes = [8, 1], strides = [1, 1]} : vector<8x16xi32> to vector<8x1xi32>
    %190 = vector.broadcast %189 : vector<8x1xi32> to vector<8x64xi32>
    %191 = arith.cmpi eq, %6, %190 : vector<8x64xi32>
    %cst_38 = arith.constant 0.000000e+00 : f32
    %192 = vector.broadcast %cst_38 : f32 to vector<8x64xf32>
    %193 = arith.select %191, %5, %192 : vector<8x64xi1>, vector<8x64xf32>
    %cst_39 = arith.constant dense<0.000000e+00> : vector<8xf32>
    %194 = vector.multi_reduction <add>, %193, %cst_39 [1] : vector<8x64xf32> to vector<8xf32>
    %195 = vector.shape_cast %194 : vector<8xf32> to vector<8x1xf32>
    %c15_i32 = arith.constant 15 : i32
    %196 = vector.broadcast %c15_i32 : i32 to vector<8x16xi32>
    %197 = arith.cmpi eq, %7, %196 : vector<8x16xi32>
    %198 = vector.shape_cast %195 : vector<8x1xf32> to vector<8x1xf32>
    %199 = vector.broadcast %198 : vector<8x1xf32> to vector<8x16xf32>
    %200 = arith.select %197, %199, %188 : vector<8x16xi1>, vector<8x16xf32>
    %cst_40 = arith.constant dense<0xFF800000> : vector<8xf32>
    %201 = vector.multi_reduction <maximumf>, %200, %cst_40 [1] : vector<8x16xf32> to vector<8xf32>
    %202 = vector.shape_cast %201 : vector<8xf32> to vector<8x1xf32>
    %203 = vector.broadcast %202 : vector<8x1xf32> to vector<8x16xf32>
    %204 = arith.subf %200, %203 : vector<8x16xf32>
    %205 = math.exp %204 : vector<8x16xf32>
    %cst_41 = arith.constant dense<0.000000e+00> : vector<8xf32>
    %206 = vector.multi_reduction <add>, %205, %cst_41 [1] : vector<8x16xf32> to vector<8xf32>
    %207 = vector.shape_cast %206 : vector<8xf32> to vector<8x1xf32>
    %208 = tpu.reciprocal %207 {approx = true} : vector<8x1xf32> -> vector<8x1xf32>
    %209 = vector.broadcast %208 : vector<8x1xf32> to vector<8x16xf32>
    %210 = arith.mulf %205, %209 : vector<8x16xf32>
    %c0_i32_42 = arith.constant 0 : i32
    %211 = vector.broadcast %c0_i32_42 : i32 to vector<8x16xi32>
    %212 = arith.cmpi eq, %1, %211 : vector<8x16xi32>
    %cst_43 = arith.constant 0.000000e+00 : f32
    %213 = vector.broadcast %cst_43 : f32 to vector<8x16xf32>
    %214 = arith.select %212, %213, %210 : vector<8x16xi1>, vector<8x16xf32>
    %c2_i32_44 = arith.constant 2 : i32
    %215 = vector.broadcast %c2_i32_44 : i32 to vector<8x16xi32>
    %216 = arith.muli %0, %215 : vector<8x16xi32>
    %217 = arith.addi %216, %1 : vector<8x16xi32>
    %c128_i32 = arith.constant 128 : i32
    %218 = vector.broadcast %c128_i32 : i32 to vector<8x16xi32>
    %219 = arith.muli %7, %218 : vector<8x16xi32>
    %220 = arith.addi %219, %217 : vector<8x16xi32>
    %221 = tpu.iota {dimensions = array<i32: 1>} : vector<8x128xi32>
    %c0_i32_45 = arith.constant 0 : i32
    %222 = vector.broadcast %c0_i32_45 : i32 to vector<8x128xi32>
    %cst_46 = arith.constant dense<0xFF800000> : vector<8xf32>
    %223 = vector.multi_reduction <maximumf>, %214, %cst_46 [1] : vector<8x16xf32> to vector<8xf32>
    %224 = vector.shape_cast %223 : vector<8xf32> to vector<8x1xf32>
    %225 = vector.broadcast %224 : vector<8x1xf32> to vector<8x16xf32>
    %226 = arith.cmpf oeq, %214, %225 : vector<8x16xf32>
    %c2048_i32 = arith.constant 2048 : i32
    %227 = vector.broadcast %c2048_i32 : i32 to vector<8x16xi32>
    %228 = arith.select %226, %220, %227 : vector<8x16xi1>, vector<8x16xi32>
    %cst_47 = arith.constant dense<2147483647> : vector<8xi32>
    %229 = vector.multi_reduction <minsi>, %228, %cst_47 [1] : vector<8x16xi32> to vector<8xi32>
    %230 = vector.shape_cast %229 : vector<8xi32> to vector<8x1xi32>
    %c7_i32_48 = arith.constant 7 : i32
    %231 = vector.broadcast %c7_i32_48 : i32 to vector<8x1xi32>
    %232 = arith.shrsi %230, %231 : vector<8x1xi32>
    %c127_i32 = arith.constant 127 : i32
    %233 = vector.broadcast %c127_i32 : i32 to vector<8x1xi32>
    %234 = arith.andi %230, %233 : vector<8x1xi32>
    %c0_i32_49 = arith.constant 0 : i32
    %235 = vector.broadcast %c0_i32_49 : i32 to vector<8x128xi32>
    %236 = arith.cmpi eq, %221, %235 : vector<8x128xi32>
    %c1_i32_50 = arith.constant 1 : i32
    %237 = vector.broadcast %c1_i32_50 : i32 to vector<8x1xi32>
    %238 = arith.shrsi %234, %237 : vector<8x1xi32>
    %239 = vector.shape_cast %238 : vector<8x1xi32> to vector<8x1xi32>
    %240 = vector.broadcast %239 : vector<8x1xi32> to vector<8x128xi32>
    %241 = arith.select %236, %240, %222 : vector<8x128xi1>, vector<8x128xi32>
    %c4_i32_51 = arith.constant 4 : i32
    %242 = vector.broadcast %c4_i32_51 : i32 to vector<8x128xi32>
    %243 = arith.cmpi eq, %221, %242 : vector<8x128xi32>
    %c1_i32_52 = arith.constant 1 : i32
    %244 = vector.broadcast %c1_i32_52 : i32 to vector<8x1xi32>
    %245 = arith.andi %234, %244 : vector<8x1xi32>
    %246 = vector.shape_cast %245 : vector<8x1xi32> to vector<8x1xi32>
    %247 = vector.broadcast %246 : vector<8x1xi32> to vector<8x128xi32>
    %248 = arith.select %243, %247, %241 : vector<8x128xi1>, vector<8x128xi32>
    %249 = vector.broadcast %232 : vector<8x1xi32> to vector<8x16xi32>
    %250 = arith.cmpi eq, %7, %249 : vector<8x16xi32>
    %cst_53 = arith.constant -1.000000e+00 : f32
    %251 = vector.broadcast %cst_53 : f32 to vector<8x16xf32>
    %252 = arith.select %250, %251, %214 : vector<8x16xi1>, vector<8x16xf32>
    %cst_54 = arith.constant dense<0xFF800000> : vector<8xf32>
    %253 = vector.multi_reduction <maximumf>, %252, %cst_54 [1] : vector<8x16xf32> to vector<8xf32>
    %254 = vector.shape_cast %253 : vector<8xf32> to vector<8x1xf32>
    %255 = vector.broadcast %254 : vector<8x1xf32> to vector<8x16xf32>
    %256 = arith.cmpf oeq, %252, %255 : vector<8x16xf32>
    %c2048_i32_55 = arith.constant 2048 : i32
    %257 = vector.broadcast %c2048_i32_55 : i32 to vector<8x16xi32>
    %258 = arith.select %256, %220, %257 : vector<8x16xi1>, vector<8x16xi32>
    %cst_56 = arith.constant dense<2147483647> : vector<8xi32>
    %259 = vector.multi_reduction <minsi>, %258, %cst_56 [1] : vector<8x16xi32> to vector<8xi32>
    %260 = vector.shape_cast %259 : vector<8xi32> to vector<8x1xi32>
    %c7_i32_57 = arith.constant 7 : i32
    %261 = vector.broadcast %c7_i32_57 : i32 to vector<8x1xi32>
    %262 = arith.shrsi %260, %261 : vector<8x1xi32>
    %c127_i32_58 = arith.constant 127 : i32
    %263 = vector.broadcast %c127_i32_58 : i32 to vector<8x1xi32>
    %264 = arith.andi %260, %263 : vector<8x1xi32>
    %c1_i32_59 = arith.constant 1 : i32
    %265 = vector.broadcast %c1_i32_59 : i32 to vector<8x128xi32>
    %266 = arith.cmpi eq, %221, %265 : vector<8x128xi32>
    %c1_i32_60 = arith.constant 1 : i32
    %267 = vector.broadcast %c1_i32_60 : i32 to vector<8x1xi32>
    %268 = arith.shrsi %264, %267 : vector<8x1xi32>
    %269 = vector.shape_cast %268 : vector<8x1xi32> to vector<8x1xi32>
    %270 = vector.broadcast %269 : vector<8x1xi32> to vector<8x128xi32>
    %271 = arith.select %266, %270, %248 : vector<8x128xi1>, vector<8x128xi32>
    %c5_i32_61 = arith.constant 5 : i32
    %272 = vector.broadcast %c5_i32_61 : i32 to vector<8x128xi32>
    %273 = arith.cmpi eq, %221, %272 : vector<8x128xi32>
    %c1_i32_62 = arith.constant 1 : i32
    %274 = vector.broadcast %c1_i32_62 : i32 to vector<8x1xi32>
    %275 = arith.andi %264, %274 : vector<8x1xi32>
    %276 = vector.shape_cast %275 : vector<8x1xi32> to vector<8x1xi32>
    %277 = vector.broadcast %276 : vector<8x1xi32> to vector<8x128xi32>
    %278 = arith.select %273, %277, %271 : vector<8x128xi1>, vector<8x128xi32>
    %279 = vector.broadcast %262 : vector<8x1xi32> to vector<8x16xi32>
    %280 = arith.cmpi eq, %7, %279 : vector<8x16xi32>
    %cst_63 = arith.constant -1.000000e+00 : f32
    %281 = vector.broadcast %cst_63 : f32 to vector<8x16xf32>
    %282 = arith.select %280, %281, %252 : vector<8x16xi1>, vector<8x16xf32>
    %cst_64 = arith.constant dense<0xFF800000> : vector<8xf32>
    %283 = vector.multi_reduction <maximumf>, %282, %cst_64 [1] : vector<8x16xf32> to vector<8xf32>
    %284 = vector.shape_cast %283 : vector<8xf32> to vector<8x1xf32>
    %285 = vector.broadcast %284 : vector<8x1xf32> to vector<8x16xf32>
    %286 = arith.cmpf oeq, %282, %285 : vector<8x16xf32>
    %c2048_i32_65 = arith.constant 2048 : i32
    %287 = vector.broadcast %c2048_i32_65 : i32 to vector<8x16xi32>
    %288 = arith.select %286, %220, %287 : vector<8x16xi1>, vector<8x16xi32>
    %cst_66 = arith.constant dense<2147483647> : vector<8xi32>
    %289 = vector.multi_reduction <minsi>, %288, %cst_66 [1] : vector<8x16xi32> to vector<8xi32>
    %290 = vector.shape_cast %289 : vector<8xi32> to vector<8x1xi32>
    %c7_i32_67 = arith.constant 7 : i32
    %291 = vector.broadcast %c7_i32_67 : i32 to vector<8x1xi32>
    %292 = arith.shrsi %290, %291 : vector<8x1xi32>
    %c127_i32_68 = arith.constant 127 : i32
    %293 = vector.broadcast %c127_i32_68 : i32 to vector<8x1xi32>
    %294 = arith.andi %290, %293 : vector<8x1xi32>
    %c2_i32_69 = arith.constant 2 : i32
    %295 = vector.broadcast %c2_i32_69 : i32 to vector<8x128xi32>
    %296 = arith.cmpi eq, %221, %295 : vector<8x128xi32>
    %c1_i32_70 = arith.constant 1 : i32
    %297 = vector.broadcast %c1_i32_70 : i32 to vector<8x1xi32>
    %298 = arith.shrsi %294, %297 : vector<8x1xi32>
    %299 = vector.shape_cast %298 : vector<8x1xi32> to vector<8x1xi32>
    %300 = vector.broadcast %299 : vector<8x1xi32> to vector<8x128xi32>
    %301 = arith.select %296, %300, %278 : vector<8x128xi1>, vector<8x128xi32>
    %c6_i32_71 = arith.constant 6 : i32
    %302 = vector.broadcast %c6_i32_71 : i32 to vector<8x128xi32>
    %303 = arith.cmpi eq, %221, %302 : vector<8x128xi32>
    %c1_i32_72 = arith.constant 1 : i32
    %304 = vector.broadcast %c1_i32_72 : i32 to vector<8x1xi32>
    %305 = arith.andi %294, %304 : vector<8x1xi32>
    %306 = vector.shape_cast %305 : vector<8x1xi32> to vector<8x1xi32>
    %307 = vector.broadcast %306 : vector<8x1xi32> to vector<8x128xi32>
    %308 = arith.select %303, %307, %301 : vector<8x128xi1>, vector<8x128xi32>
    %309 = vector.broadcast %292 : vector<8x1xi32> to vector<8x16xi32>
    %310 = arith.cmpi eq, %7, %309 : vector<8x16xi32>
    %cst_73 = arith.constant -1.000000e+00 : f32
    %311 = vector.broadcast %cst_73 : f32 to vector<8x16xf32>
    %312 = arith.select %310, %311, %282 : vector<8x16xi1>, vector<8x16xf32>
    %cst_74 = arith.constant dense<0xFF800000> : vector<8xf32>
    %313 = vector.multi_reduction <maximumf>, %312, %cst_74 [1] : vector<8x16xf32> to vector<8xf32>
    %314 = vector.shape_cast %313 : vector<8xf32> to vector<8x1xf32>
    %315 = vector.broadcast %314 : vector<8x1xf32> to vector<8x16xf32>
    %316 = arith.cmpf oeq, %312, %315 : vector<8x16xf32>
    %c2048_i32_75 = arith.constant 2048 : i32
    %317 = vector.broadcast %c2048_i32_75 : i32 to vector<8x16xi32>
    %318 = arith.select %316, %220, %317 : vector<8x16xi1>, vector<8x16xi32>
    %cst_76 = arith.constant dense<2147483647> : vector<8xi32>
    %319 = vector.multi_reduction <minsi>, %318, %cst_76 [1] : vector<8x16xi32> to vector<8xi32>
    %320 = vector.shape_cast %319 : vector<8xi32> to vector<8x1xi32>
    %c127_i32_77 = arith.constant 127 : i32
    %321 = vector.broadcast %c127_i32_77 : i32 to vector<8x1xi32>
    %322 = arith.andi %320, %321 : vector<8x1xi32>
    %c3_i32_78 = arith.constant 3 : i32
    %323 = vector.broadcast %c3_i32_78 : i32 to vector<8x128xi32>
    %324 = arith.cmpi eq, %221, %323 : vector<8x128xi32>
    %c1_i32_79 = arith.constant 1 : i32
    %325 = vector.broadcast %c1_i32_79 : i32 to vector<8x1xi32>
    %326 = arith.shrsi %322, %325 : vector<8x1xi32>
    %327 = vector.shape_cast %326 : vector<8x1xi32> to vector<8x1xi32>
    %328 = vector.broadcast %327 : vector<8x1xi32> to vector<8x128xi32>
    %329 = arith.select %324, %328, %308 : vector<8x128xi1>, vector<8x128xi32>
    %c7_i32_80 = arith.constant 7 : i32
    %330 = vector.broadcast %c7_i32_80 : i32 to vector<8x128xi32>
    %331 = arith.cmpi eq, %221, %330 : vector<8x128xi32>
    %c1_i32_81 = arith.constant 1 : i32
    %332 = vector.broadcast %c1_i32_81 : i32 to vector<8x1xi32>
    %333 = arith.andi %322, %332 : vector<8x1xi32>
    %334 = vector.shape_cast %333 : vector<8x1xi32> to vector<8x1xi32>
    %335 = vector.broadcast %334 : vector<8x1xi32> to vector<8x128xi32>
    %336 = arith.select %331, %335, %329 : vector<8x128xi1>, vector<8x128xi32>
    %c0_82 = arith.constant 0 : index
    %c0_83 = arith.constant 0 : index
    %337 = vector.load %arg5[%c0_82, %c0_83] : memref<8x128xi32, #tpu.memory_space<vmem>>, vector<8x128xi32>
    tpu.vector_store %arg5[%c0_82, %c0_83], %336 {strides = array<i32>} : memref<8x128xi32, #tpu.memory_space<vmem>>, vector<8x128xi32>,
    return
  }
  func.func @transform_0(%arg0: i32) -> (i32, i32) {
    %c0_i32 = arith.constant 0 : i32
    %c0_i32_0 = arith.constant 0 : i32
    return %arg0, %c0_i32 : i32, i32
  }
  func.func @transform_1(%arg0: i32) -> (i32, i32) {
    %c0_i32 = arith.constant 0 : i32
    %c0_i32_0 = arith.constant 0 : i32
    return %arg0, %c0_i32 : i32, i32
  }
  func.func @transform_2(%arg0: i32) -> (i32, i32) {
    %c0_i32 = arith.constant 0 : i32
    %c0_i32_0 = arith.constant 0 : i32
    return %arg0, %c0_i32 : i32, i32
  }
  func.func @transform_3(%arg0: i32) -> (i32, i32) {
    %c0_i32 = arith.constant 0 : i32
    %c0_i32_0 = arith.constant 0 : i32
    %c0_i32_1 = arith.constant 0 : i32
    return %c0_i32, %c0_i32_0 : i32, i32
  }
  func.func @transform_4(%arg0: i32) -> (i32, i32) {
    %c0_i32 = arith.constant 0 : i32
    %c0_i32_0 = arith.constant 0 : i32
    return %arg0, %c0_i32 : i32, i32
  }
}

</mosaic_0001>

<llo_original>
// kernel: memory_update.1
$region0: #{memory_update.1}
  #allocation0 [shape = 'u32[]', space=smem, size = 0x4, offset = 0x4, fixed_abs, tag = 'smem constant byte address 0x4 - core index']
  #allocation1 [shape = 'u32[144,128]{1,0:T(1,128)}', space=vmem, size = 0x12000, scoped, tag = 'internal scratch']
  %s0 = inlined_call_operand.vmem [shape: s32[8,16], index: 0, kind: input, shape index: {}]
  %s1 = inlined_call_operand.vmem [shape: s32[8,16], index: 1, kind: input, shape index: {}]
  %s2 = inlined_call_operand.vmem [shape: f32[8,32], index: 2, kind: input, shape index: {}]
  %s3 = inlined_call_operand.vmem [shape: bf16[64,32], index: 3, kind: input, shape index: {}]
  %s4 = inlined_call_operand.vmem [shape: s32[8,128], index: 4, kind: output, shape index: {}]
  %s5 = sld [smem:[#allocation0]]
  $region26: #{memory_update.1} parent=0
    _
  %s7 = ssub.s32 1, %s5
  %s8 = scalar_select 0, %s7, %s5
  // Predicated region
  $region2: #{memory_update.1} parent=0 // pred_check
    _
  $region3: #{memory_update.1} parent=0 // pred_check_branch
    %10 = sbr.rel (0) target = $region5
  $region4: #{memory_update.1} parent=0 // pred_region
    _
  $region5: #{memory_update.1} parent=0 // pred_fallthru
    _
  // Predicated region
  $region6: #{memory_update.1} parent=0 // pred_check
    _
  $region7: #{memory_update.1} parent=0 // pred_check_branch
    %12 = sbr.rel (0) target = $region9
  $region8: #{memory_update.1} parent=0 // pred_region
    _
  $region9: #{memory_update.1} parent=0 // pred_fallthru
    _
  // Predicated region
  $region10: #{memory_update.1} parent=0 // pred_check
    _
  $region11: #{memory_update.1} parent=0 // pred_check_branch
    %14 = sbr.rel (0) target = $region13
  $region12: #{memory_update.1} parent=0 // pred_region
    _
  $region13: #{memory_update.1} parent=0 // pred_fallthru
    _
  // Predicated region
  $region14: #{memory_update.1} parent=0 // pred_check
    _
  $region15: #{memory_update.1} parent=0 // pred_check_branch
    %16 = sbr.rel (0) target = $region17
  $region16: #{memory_update.1} parent=0 // pred_region
    _
  $region17: #{memory_update.1} parent=0 // pred_fallthru
    _
  %v17 = vld [vmem:[%s0] sm:$0xff]
  %v18 = vld [vmem:[%s1] sm:$0xff]
  %v19 = vld [vmem:[%s2] sm:$0xff]
  %v20 = vld [vmem:[%s3] sm:$0xf]
  %v21 = vld [vmem:[%s3 + $0x4] sm:$0xf]
  %v22 = vld [vmem:[%s3 + $0x8] sm:$0xf]
  %v23 = vld [vmem:[%s3 + $0xc] sm:$0xf]
  %v24 = vld [vmem:[%s3 + $0x10] sm:$0xf]
  %v25 = vld [vmem:[%s3 + $0x14] sm:$0xf]
  %v26 = vld [vmem:[%s3 + $0x18] sm:$0xf]
  %v27 = vld [vmem:[%s3 + $0x1c] sm:$0xf]
  %v28 = vunpack.c.l.bf16 %v20
  %v29 = vunpack.c.l.bf16 %v21
  %v30 = vunpack.c.l.bf16 %v22
  %v31 = vunpack.c.l.bf16 %v23
  %v32 = vunpack.c.l.bf16 %v24
  %v33 = vunpack.c.l.bf16 %v25
  %v34 = vunpack.c.l.bf16 %v26
  %v35 = vunpack.c.l.bf16 %v27
  %vm36 = vcmask 261120
  %v38 = vsel %vm36, %v19, 0
  %v41 = vsel %vm36, %v28, 0
  %v44 = vsel %vm36, %v29, 0
  %v47 = vsel %vm36, %v30, 0
  %v50 = vsel %vm36, %v31, 0
  %v53 = vsel %vm36, %v32, 0
  %v56 = vsel %vm36, %v33, 0
  %v59 = vsel %vm36, %v34, 0
  %v62 = vsel %vm36, %v35, 0
  %64 = vmatprep.subr.mxu0 0.0
  %65 = vmatpush1.xpose.msra.mxu0 0.0
  %66 = vmatprep.subr.mxu0 0.0
  %67 = vmatpush1.xpose.msra.mxu0 0.0
  %68 = vmatprep.subr.mxu0 0.0
  %69 = vmatpush1.xpose.msra.mxu0 0.0
  %70 = vmatprep.subr.mxu0 0.0
  %71 = vmatpush1.xpose.msra.mxu0 0.0
  %72 = vmatprep.subr.mxu0 0.0
  %73 = vmatpush1.xpose.msra.mxu0 0.0
  %74 = vmatprep.subr.mxu0 0.0
  %75 = vmatpush1.xpose.msra.mxu0 0.0
  %76 = vmatprep.subr.mxu0 0.0
  %77 = vmatpush1.xpose.msra.mxu0 0.0
  %78 = vmatprep.subr.mxu0 0.0
  %79 = vmatpush1.xpose.msra.mxu0 0.0
  %80 = vmatprep.subr.mxu0 0.0
  %81 = vmatpush1.xpose.msra.mxu0 %v62
  %82 = vmatprep.subr.mxu0 0.0
  %83 = vmatpush1.xpose.msra.mxu0 %v59
  %84 = vmatprep.subr.mxu0 0.0
  %85 = vmatpush1.xpose.msra.mxu0 %v56
  %86 = vmatprep.subr.mxu0 0.0
  %87 = vmatpush1.xpose.msra.mxu0 %v53
  %88 = vmatprep.subr.mxu0 0.0
  %89 = vmatpush1.xpose.msra.mxu0 %v50
  %90 = vmatprep.subr.mxu0 0.0
  %91 = vmatpush1.xpose.msra.mxu0 %v47
  %92 = vmatprep.subr.mxu0 0.0
  %93 = vmatpush1.xpose.msra.mxu0 %v44
  %94 = vmatprep.subr.mxu0 0.0
  %95 = vmatpush1.xpose.msra.mxu0 %v41
  %96 = vmatprep.subr.mxu0 0.0
  %97 = vmatpush2.xpose.msra.mxu0 0.0
  %98 = vmatprep.subr.mxu0 0.0
  %99 = vmatpush2.xpose.msra.mxu0 0.0
  %100 = vmatprep.subr.mxu0 0.0
  %101 = vmatpush2.xpose.msra.mxu0 0.0
  %102 = vmatprep.subr.mxu0 0.0
  %103 = vmatpush2.xpose.msra.mxu0 0.0
  %104 = vmatprep.subr.mxu0 0.0
  %105 = vmatpush2.xpose.msra.mxu0 0.0
  %106 = vmatprep.subr.mxu0 0.0
  %107 = vmatpush2.xpose.msra.mxu0 0.0
  %108 = vmatprep.subr.mxu0 0.0
  %109 = vmatpush2.xpose.msra.mxu0 0.0
  %110 = vmatprep.subr.mxu0 0.0
  %111 = vmatpush2.xpose.msra.mxu0 0.0
  %112 = vmatprep.subr.mxu0 0.0
  %113 = vmatpush2.xpose.msra.mxu0 0.0
  %114 = vmatprep.subr.mxu0 0.0
  %115 = vmatpush2.xpose.msra.mxu0 0.0
  %116 = vmatprep.subr.mxu0 0.0
  %117 = vmatpush2.xpose.msra.mxu0 0.0
  %118 = vmatprep.subr.mxu0 0.0
  %119 = vmatpush2.xpose.msra.mxu0 0.0
  %120 = vmatprep.subr.mxu0 0.0
  %121 = vmatpush2.xpose.msra.mxu0 0.0
  %122 = vmatprep.subr.mxu0 0.0
  %123 = vmatpush2.xpose.msra.mxu0 0.0
  %124 = vmatprep.subr.mxu0 0.0
  %125 = vmatpush2.xpose.msra.mxu0 0.0
  %126 = vmatprep.subr.mxu0 0.0
  %127 = vmatpush2.xpose.msra.mxu0 0.0
  %128 = vmatprep.mubr.f32.mxu0 0.0
  %129 = vmatmul.mubr.f32.gmra.mxu0 %v38
  %v130 = vpop.f32.mrf.mxu0
  %v131 = vadd.f32 0.0, %v130
  %v132 = vpop.f32.mrf.mxu0
  %133 = vdwg.mxu0
  %v134 = vlaneseq
  %v135 = vand.u32 %v134, 127
  %136 = vset.pattern.permute.xlu0 0
  %137 = vperm.xlu0 %136, %v17
  %v138 = vpop.permute.xlu0 %137
  %vm139 = vcmp.eq.s32.totalorder %v135, %v138
  %v140 = vsel %vm139, %v131, 0.0
  %vm141 = vcmask 523264
  %v142 = vsel %vm141, %v140, 0.0
  %143 = vadd.xlane.f32.xlu0 %v142
  %v144 = vpop.xlane.xlu0 %143
  %vm145 = vcmp.eq.s32.totalorder %v135, 0
  %v146 = vsel %vm145, %v144, 0.0
  %147 = vset.pattern.permute.xlu0 1
  %148 = vperm.xlu0 %147, %v17
  %v149 = vpop.permute.xlu0 %148
  %vm150 = vcmp.eq.s32.totalorder %v135, %v149
  %v151 = vsel %vm150, %v131, 0.0
  %v152 = vsel %vm141, %v151, 0.0
  %153 = vadd.xlane.f32.xlu0 %v152
  %v154 = vpop.xlane.xlu0 %153
  %vm155 = vcmp.eq.s32.totalorder %v135, 1
  %v156 = vsel %vm155, %v154, %v146
  %157 = vset.pattern.permute.xlu0 2
  %158 = vperm.xlu0 %157, %v17
  %v159 = vpop.permute.xlu0 %158
  %vm160 = vcmp.eq.s32.totalorder %v135, %v159
  %v161 = vsel %vm160, %v131, 0.0
  %v162 = vsel %vm141, %v161, 0.0
  %163 = vadd.xlane.f32.xlu0 %v162
  %v164 = vpop.xlane.xlu0 %163
  %vm165 = vcmp.eq.s32.totalorder %v135, 2
  %v166 = vsel %vm165, %v164, %v156
  %167 = vset.pattern.permute.xlu0 3
  %168 = vperm.xlu0 %167, %v17
  %v169 = vpop.permute.xlu0 %168
  %vm170 = vcmp.eq.s32.totalorder %v135, %v169
  %v171 = vsel %vm170, %v131, 0.0
  %v172 = vsel %vm141, %v171, 0.0
  %173 = vadd.xlane.f32.xlu0 %v172
  %v174 = vpop.xlane.xlu0 %173
  %vm175 = vcmp.eq.s32.totalorder %v135, 3
  %v176 = vsel %vm175, %v174, %v166
  %177 = vset.pattern.permute.xlu0 4
  %178 = vperm.xlu0 %177, %v17
  %v179 = vpop.permute.xlu0 %178
  %vm180 = vcmp.eq.s32.totalorder %v135, %v179
  %v181 = vsel %vm180, %v131, 0.0
  %v182 = vsel %vm141, %v181, 0.0
  %183 = vadd.xlane.f32.xlu0 %v182
  %v184 = vpop.xlane.xlu0 %183
  %vm185 = vcmp.eq.s32.totalorder %v135, 4
  %v186 = vsel %vm185, %v184, %v176
  %187 = vset.pattern.permute.xlu0 5
  %188 = vperm.xlu0 %187, %v17
  %v189 = vpop.permute.xlu0 %188
  %vm190 = vcmp.eq.s32.totalorder %v135, %v189
  %v191 = vsel %vm190, %v131, 0.0
  %v192 = vsel %vm141, %v191, 0.0
  %193 = vadd.xlane.f32.xlu0 %v192
  %v194 = vpop.xlane.xlu0 %193
  %vm195 = vcmp.eq.s32.totalorder %v135, 5
  %v196 = vsel %vm195, %v194, %v186
  %197 = vset.pattern.permute.xlu0 6
  %198 = vperm.xlu0 %197, %v17
  %v199 = vpop.permute.xlu0 %198
  %vm200 = vcmp.eq.s32.totalorder %v135, %v199
  %v201 = vsel %vm200, %v131, 0.0
  %v202 = vsel %vm141, %v201, 0.0
  %203 = vadd.xlane.f32.xlu0 %v202
  %v204 = vpop.xlane.xlu0 %203
  %vm205 = vcmp.eq.s32.totalorder %v135, 6
  %v206 = vsel %vm205, %v204, %v196
  %207 = vset.pattern.permute.xlu0 7
  %208 = vperm.xlu0 %207, %v17
  %v209 = vpop.permute.xlu0 %208
  %vm210 = vcmp.eq.s32.totalorder %v135, %v209
  %v211 = vsel %vm210, %v131, 0.0
  %v212 = vsel %vm141, %v211, 0.0
  %213 = vadd.xlane.f32.xlu0 %v212
  %v214 = vpop.xlane.xlu0 %213
  %vm215 = vcmp.eq.s32.totalorder %v135, 7
  %v216 = vsel %vm215, %v214, %v206
  %217 = vset.pattern.permute.xlu0 8
  %218 = vperm.xlu0 %217, %v17
  %v219 = vpop.permute.xlu0 %218
  %vm220 = vcmp.eq.s32.totalorder %v135, %v219
  %v221 = vsel %vm220, %v131, 0.0
  %v222 = vsel %vm141, %v221, 0.0
  %223 = vadd.xlane.f32.xlu0 %v222
  %v224 = vpop.xlane.xlu0 %223
  %vm225 = vcmp.eq.s32.totalorder %v135, 8
  %v226 = vsel %vm225, %v224, %v216
  %227 = vset.pattern.permute.xlu0 9
  %228 = vperm.xlu0 %227, %v17
  %v229 = vpop.permute.xlu0 %228
  %vm230 = vcmp.eq.s32.totalorder %v135, %v229
  %v231 = vsel %vm230, %v131, 0.0
  %v232 = vsel %vm141, %v231, 0.0
  %233 = vadd.xlane.f32.xlu0 %v232
  %v234 = vpop.xlane.xlu0 %233
  %vm235 = vcmp.eq.s32.totalorder %v135, 9
  %v236 = vsel %vm235, %v234, %v226
  %237 = vset.pattern.permute.xlu0 10
  %238 = vperm.xlu0 %237, %v17
  %v239 = vpop.permute.xlu0 %238
  %vm240 = vcmp.eq.s32.totalorder %v135, %v239
  %v241 = vsel %vm240, %v131, 0.0
  %v242 = vsel %vm141, %v241, 0.0
  %243 = vadd.xlane.f32.xlu0 %v242
  %v244 = vpop.xlane.xlu0 %243
  %vm245 = vcmp.eq.s32.totalorder %v135, 10
  %v246 = vsel %vm245, %v244, %v236
  %247 = vset.pattern.permute.xlu0 11
  %248 = vperm.xlu0 %247, %v17
  %v249 = vpop.permute.xlu0 %248
  %vm250 = vcmp.eq.s32.totalorder %v135, %v249
  %v251 = vsel %vm250, %v131, 0.0
  %v252 = vsel %vm141, %v251, 0.0
  %253 = vadd.xlane.f32.xlu0 %v252
  %v254 = vpop.xlane.xlu0 %253
  %vm255 = vcmp.eq.s32.totalorder %v135, 11
  %v256 = vsel %vm255, %v254, %v246
  %257 = vset.pattern.permute.xlu0 12
  %258 = vperm.xlu0 %257, %v17
  %v259 = vpop.permute.xlu0 %258
  %vm260 = vcmp.eq.s32.totalorder %v135, %v259
  %v261 = vsel %vm260, %v131, 0.0
  %v262 = vsel %vm141, %v261, 0.0
  %263 = vadd.xlane.f32.xlu0 %v262
  %v264 = vpop.xlane.xlu0 %263
  %vm265 = vcmp.eq.s32.totalorder %v135, 12
  %v266 = vsel %vm265, %v264, %v256
  %267 = vset.pattern.permute.xlu0 13
  %268 = vperm.xlu0 %267, %v17
  %v269 = vpop.permute.xlu0 %268
  %vm270 = vcmp.eq.s32.totalorder %v135, %v269
  %v271 = vsel %vm270, %v131, 0.0
  %v272 = vsel %vm141, %v271, 0.0
  %273 = vadd.xlane.f32.xlu0 %v272
  %v274 = vpop.xlane.xlu0 %273
  %vm275 = vcmp.eq.s32.totalorder %v135, 13
  %v276 = vsel %vm275, %v274, %v266
  %277 = vset.pattern.permute.xlu0 14
  %278 = vperm.xlu0 %277, %v17
  %v279 = vpop.permute.xlu0 %278
  %vm280 = vcmp.eq.s32.totalorder %v135, %v279
  %v281 = vsel %vm280, %v131, 0.0
  %v282 = vsel %vm141, %v281, 0.0
  %283 = vadd.xlane.f32.xlu0 %v282
  %v284 = vpop.xlane.xlu0 %283
  %vm285 = vcmp.eq.s32.totalorder %v135, 14
  %v286 = vsel %vm285, %v284, %v276
  %287 = vset.pattern.permute.xlu0 15
  %288 = vperm.xlu0 %287, %v17
  %v289 = vpop.permute.xlu0 %288
  %vm290 = vcmp.eq.s32.totalorder %v135, %v289
  %v291 = vsel %vm290, %v131, 0.0
  %v292 = vsel %vm141, %v291, 0.0
  %293 = vadd.xlane.f32.xlu0 %v292
  %v294 = vpop.xlane.xlu0 %293
  %vm295 = vcmp.eq.s32.totalorder %v135, 15
  %v296 = vsel %vm295, %v294, %v286
  %vm297 = vcmask 130048
  %v298 = vsel %vm297, %v296, -inf
  %299 = vmax.xlane.f32.xlu0 %v298
  %v300 = vpop.xlane.xlu0 %299
  %v301 = vsub.f32 %v296, %v300
  %v302 = vmul.f32 %v301, 1.442695
  %v303 = vpow.pop %v302
  %v304 = vsel %vm297, %v303, 0.0
  %305 = vadd.xlane.f32.xlu0 %v304
  %v306 = vpop.xlane.xlu0 %305
  %v307 = vrcp.pop %v306
  %v308 = vmul.f32 %v303, %v307
  %vm309 = vcmp.eq.s32.totalorder %v18, 0
  %v310 = vsel %vm309, 0.0, %v308
  %v311 = vmul.u32 %v17, 2
  %v312 = vadd.s32 %v311, %v18
  %v313 = vmul.u32 %v135, 128
  %v314 = vadd.s32 %v313, %v312
  %v315 = vsel %vm297, %v310, -inf
  %316 = vmax.xlane.f32.xlu0 %v315
  %v317 = vpop.xlane.xlu0 %316
  %vm318 = vcmp.eq.f32.partialorder %v310, %v317
  %v319 = vsel %vm318, %v314, 2048
  %v320 = vsel %vm297, %v319, 2147483647
  %v321 = vand.u32 %v320, 65535
  %v322 = vshra.s32 %v320, 16
  %v323 = vcvt.s32.f32 %v321
  %v324 = vcvt.s32.f32 %v322
  %325 = vmin.xlane.f32.xlu0 %v324
  %v326 = vpop.xlane.xlu0 %325
  %vm327 = vcmp.eq.f32.partialorder %v324, %v326
  %v328 = vsel %vm327, %v323, inf
  %329 = vmin.xlane.f32.xlu0 %v328
  %v330 = vpop.xlane.xlu0 %329
  %v331 = vcvt.f32.s32 %v330
  %v332 = vcvt.f32.s32 %v326
  %v333 = vshll.u32 %v332, 16
  %v334 = vadd.s32 %v333, %v331
  %v335 = vshra.s32 %v334, 7
  %v336 = vand.u32 %v334, 127
  %v337 = vshra.s32 %v336, 1
  %v338 = vsel %vm145, %v337, 0
  %v339 = vand.u32 %v336, 1
  %v340 = vsel %vm185, %v339, %v338
  %vm341 = vcmp.eq.s32.totalorder %v135, %v335
  %v342 = vsel %vm341, -1.0, %v310
  %v343 = vsel %vm297, %v342, -inf
  %344 = vmax.xlane.f32.xlu0 %v343
  %v345 = vpop.xlane.xlu0 %344
  %vm346 = vcmp.eq.f32.partialorder %v342, %v345
  %v347 = vsel %vm346, %v314, 2048
  %v348 = vsel %vm297, %v347, 2147483647
  %v349 = vand.u32 %v348, 65535
  %v350 = vshra.s32 %v348, 16
  %v351 = vcvt.s32.f32 %v349
  %v352 = vcvt.s32.f32 %v350
  %353 = vmin.xlane.f32.xlu0 %v352
  %v354 = vpop.xlane.xlu0 %353
  %vm355 = vcmp.eq.f32.partialorder %v352, %v354
  %v356 = vsel %vm355, %v351, inf
  %357 = vmin.xlane.f32.xlu0 %v356
  %v358 = vpop.xlane.xlu0 %357
  %v359 = vcvt.f32.s32 %v358
  %v360 = vcvt.f32.s32 %v354
  %v361 = vshll.u32 %v360, 16
  %v362 = vadd.s32 %v361, %v359
  %v363 = vshra.s32 %v362, 7
  %v364 = vand.u32 %v362, 127
  %v365 = vshra.s32 %v364, 1
  %v366 = vsel %vm155, %v365, %v340
  %v367 = vand.u32 %v364, 1
  %v368 = vsel %vm195, %v367, %v366
  %vm369 = vcmp.eq.s32.totalorder %v135, %v363
  %v370 = vsel %vm369, -1.0, %v342
  %v371 = vsel %vm297, %v370, -inf
  %372 = vmax.xlane.f32.xlu0 %v371
  %v373 = vpop.xlane.xlu0 %372
  %vm374 = vcmp.eq.f32.partialorder %v370, %v373
  %v375 = vsel %vm374, %v314, 2048
  %v376 = vsel %vm297, %v375, 2147483647
  %v377 = vand.u32 %v376, 65535
  %v378 = vshra.s32 %v376, 16
  %v379 = vcvt.s32.f32 %v377
  %v380 = vcvt.s32.f32 %v378
  %381 = vmin.xlane.f32.xlu0 %v380
  %v382 = vpop.xlane.xlu0 %381
  %vm383 = vcmp.eq.f32.partialorder %v380, %v382
  %v384 = vsel %vm383, %v379, inf
  %385 = vmin.xlane.f32.xlu0 %v384
  %v386 = vpop.xlane.xlu0 %385
  %v387 = vcvt.f32.s32 %v386
  %v388 = vcvt.f32.s32 %v382
  %v389 = vshll.u32 %v388, 16
  %v390 = vadd.s32 %v389, %v387
  %v391 = vshra.s32 %v390, 7
  %v392 = vand.u32 %v390, 127
  %v393 = vshra.s32 %v392, 1
  %v394 = vsel %vm165, %v393, %v368
  %v395 = vand.u32 %v392, 1
  %v396 = vsel %vm205, %v395, %v394
  %vm397 = vcmp.eq.s32.totalorder %v135, %v391
  %v398 = vsel %vm397, -1.0, %v370
  %v399 = vsel %vm297, %v398, -inf
  %400 = vmax.xlane.f32.xlu0 %v399
  %v401 = vpop.xlane.xlu0 %400
  %vm402 = vcmp.eq.f32.partialorder %v398, %v401
  %v403 = vsel %vm402, %v314, 2048
  %v404 = vsel %vm297, %v403, 2147483647
  %v405 = vand.u32 %v404, 65535
  %v406 = vshra.s32 %v404, 16
  %v407 = vcvt.s32.f32 %v405
  %v408 = vcvt.s32.f32 %v406
  %409 = vmin.xlane.f32.xlu0 %v408
  %v410 = vpop.xlane.xlu0 %409
  %vm411 = vcmp.eq.f32.partialorder %v408, %v410
  %v412 = vsel %vm411, %v407, inf
  %413 = vmin.xlane.f32.xlu0 %v412
  %v414 = vpop.xlane.xlu0 %413
  %v415 = vcvt.f32.s32 %v414
  %v416 = vcvt.f32.s32 %v410
  %v417 = vshll.u32 %v416, 16
  %v418 = vadd.s32 %v417, %v415
  %v419 = vand.u32 %v418, 127
  %v420 = vshra.s32 %v419, 1
  %v421 = vsel %vm175, %v420, %v396
  %v422 = vand.u32 %v419, 1
  %v423 = vsel %vm215, %v422, %v421
  %424 = vst [vmem:[%s4] sm:$0xff] %v423
  // Predicated region
  $region18: #{memory_update.1} parent=0 // pred_check
    _
  $region19: #{memory_update.1} parent=0 // pred_check_branch
    %426 = sbr.rel (0) target = $region21
  $region20: #{memory_update.1} parent=0 // pred_region
    _
  $region21: #{memory_update.1} parent=0 // pred_fallthru
    _
  // Predicated region
  $region22: #{memory_update.1} parent=0 // pred_check
    _
  $region23: #{memory_update.1} parent=0 // pred_check_branch
    %428 = sbr.rel (0) target = $region25
  $region24: #{memory_update.1} parent=0 // pred_region
    _
  $region25: #{memory_update.1} parent=0 // pred_fallthru
    _

</llo_original>
